<compile_context>
chip_gen: v5e
topology: v5e:2x2
jax: 0.10.0
libtpu: 0.0.40
codegen_flags: <defaults>
</compile_context>

<pallas_src>
import jax
import jax.numpy as jnp
from jax.experimental import pallas as pl
from jax.experimental.pallas import tpu as pltpu


def _mlp_kernel(x_ref, w1_ref, b1_ref, w2_ref, b2_ref, o_ref):
    # x_ref : [TN, F ]  f32   node-major tile (ragged tail rows may be garbage)
    # w1_ref: [F , E ]  bf16  resident
    # b1_ref: [1 , E ]  f32   resident
    # w2_ref: [E , Eo]  bf16  resident
    # b2_ref: [1 , Eo]  f32   resident
    # o_ref : [TN, Eo]  output dtype
    x = x_ref[...].astype(jnp.bfloat16)
    h = jnp.dot(x, w1_ref[...], preferred_element_type=jnp.float32)      # [TN, E]
    h = h + b1_ref[...]                                                   # bias bcast over rows
    h = jnp.maximum(h, 0.01 * h)                                          # LeakyReLU(0.01)
    y = jnp.dot(h.astype(jnp.bfloat16), w2_ref[...],
                preferred_element_type=jnp.float32)                       # [TN, Eo]
    y = y + b2_ref[...]
    o_ref[...] = y.astype(o_ref.dtype)


def atom_encoder_forward(x, w1, b1, w2, b2, *, tile_n=8192, out_dtype=None):
    """Forward pass of AtomEncoderTorsionalDiffusion.

    x : [N, F] node features.
    w1: [F, E], b1: [E], w2: [E, Eo], b2: [Eo]  (weights stored [in, out], so
    the math is x @ W + b, i.e. nn.Linear with weight transposed).
    Returns [N, Eo] in `out_dtype` (default: x.dtype).
    """
    N, F = x.shape
    E = w1.shape[1]
    E_out = w2.shape[1]
    out_dtype = x.dtype if out_dtype is None else out_dtype

    # Node tile: multiple of 8 (sublane), never larger than the rounded-up
    # problem, and for large N capped so the grid keeps >= ~4 steps
    # (v7x megacore sharding / pipelining).  All static Python ints.
    n8 = pl.cdiv(N, 8) * 8
    tile_n = max(8, (int(tile_n) // 8) * 8)
    tile_n = min(tile_n, max(1024, pl.cdiv(pl.cdiv(n8, 4), 8) * 8))
    tile_n = min(tile_n, n8)
    grid = (pl.cdiv(N, tile_n),)

    # Tiny resident operands (a few KiB total).
    w1b = w1.astype(jnp.bfloat16)                  # [F, E]
    w2b = w2.astype(jnp.bfloat16)                  # [E, Eo]
    b1r = b1.reshape(1, E).astype(jnp.float32)
    b2r = b2.reshape(1, E_out).astype(jnp.float32)

    # TODO(synk): on v5e (single vector-store slot) a lane-dense feature-major
    # [Eo, N] output variant avoids the 32-lane masked stores; node-major is
    # kept here because the op stays HBM-bound and it removes any output
    # transpose / repack entirely.
    return pl.pallas_call(
        _mlp_kernel,
        out_shape=jax.ShapeDtypeStruct((N, E_out), out_dtype),
        grid_spec=pltpu.PrefetchScalarGridSpec(
            num_scalar_prefetch=0,
            grid=grid,
            in_specs=[
                pl.BlockSpec((tile_n, F), lambda i: (i, 0)),     # node tile of x
                pl.BlockSpec((F, E), lambda i: (0, 0)),          # resident W1
                pl.BlockSpec((1, E), lambda i: (0, 0)),          # resident b1
                pl.BlockSpec((E, E_out), lambda i: (0, 0)),      # resident W2
                pl.BlockSpec((1, E_out), lambda i: (0, 0)),      # resident b2
            ],
            out_specs=pl.BlockSpec((tile_n, E_out), lambda i: (i, 0)),
        ),
        compiler_params=pltpu.CompilerParams(
            dimension_semantics=("parallel",),
        ),
    )(x, w1b, b1r, w2b, b2r)


def xavier_normal(key, fan_in, fan_out, gain=1.0, dtype=jnp.float32):
    # Matches torch.nn.init.xavier_normal_: std = gain * sqrt(2 / (fan_in + fan_out))
    std = gain * (2.0 / (fan_in + fan_out)) ** 0.5
    return std * jax.random.normal(key, (fan_in, fan_out), dtype=dtype)


def reference_forward_bf16(x, w1, b1, w2, b2):
    """Pure-JAX reference doing the same bf16-operand / f32-accumulate math."""
    xb = x.astype(jnp.bfloat16)
    h = jnp.dot(xb, w1.astype(jnp.bfloat16), preferred_element_type=jnp.float32) + b1
    h = jnp.maximum(h, 0.01 * h)
    return jnp.dot(h.astype(jnp.bfloat16), w2.astype(jnp.bfloat16),
                   preferred_element_type=jnp.float32) + b2


def reference_forward_f32(x, w1, b1, w2, b2):
    h = x @ w1 + b1
    h = jnp.where(h > 0, h, 0.01 * h)
    return h @ w2 + b2


if __name__ == "__main__":
    feature_dim = 16   # input atom feature dim
    emb_dim = 32       # embedding dim

    key = jax.random.PRNGKey(0)
    kx, kw1, kw2, kx2 = jax.random.split(key, 4)

    # Deterministic synthetic params (xavier-normal weights, zero biases),
    # stored [in, out] so the math is x @ W + b as in nn.Linear.
    w1 = xavier_normal(kw1, feature_dim, emb_dim)
    b1 = jnp.zeros((emb_dim,), jnp.float32)
    w2 = xavier_normal(kw2, emb_dim, emb_dim)
    b2 = jnp.zeros((emb_dim,), jnp.float32)

    # --- test 1: N not a multiple of 128, single grid step, f32 output ---
    n_nodes = 200
    x = jax.random.normal(kx, (n_nodes, feature_dim), dtype=jnp.float32)
    out = jax.block_until_ready(atom_encoder_forward(x, w1, b1, w2, b2))
    assert out.shape == (n_nodes, emb_dim) and out.dtype == x.dtype

    ref_bf16 = reference_forward_bf16(x, w1, b1, w2, b2)
    assert jnp.allclose(out, ref_bf16, atol=2e-3, rtol=2e-3), \
        "mismatch vs bf16-matched reference"
    ref_f32 = reference_forward_f32(x, w1, b1, w2, b2)
    assert jnp.allclose(out, ref_f32, atol=5e-2, rtol=5e-2), \
        "mismatch vs f32 reference"

    # --- test 2: multi-step grid with a ragged last block (tile_n=128, N=333) ---
    n_nodes2 = 333
    x2 = jax.random.normal(kx2, (n_nodes2, feature_dim), dtype=jnp.float32)
    out2 = jax.block_until_ready(
        atom_encoder_forward(x2, w1, b1, w2, b2, tile_n=128))
    assert out2.shape == (n_nodes2, emb_dim)
    assert jnp.allclose(out2, reference_forward_bf16(x2, w1, b1, w2, b2),
                        atol=2e-3, rtol=2e-3), "mismatch on ragged multi-step grid"

    # --- test 3: bf16 writeback option (halves the dominant HBM stream) ---
    out_bf16 = jax.block_until_ready(
        atom_encoder_forward(x, w1, b1, w2, b2, out_dtype=jnp.bfloat16))
    assert out_bf16.dtype == jnp.bfloat16
    assert jnp.allclose(out_bf16.astype(jnp.float32), ref_f32,
                        atol=8e-2, rtol=8e-2), "mismatch for bf16 output"

    print("KERNEL_OK")
</pallas_src>

<mosaic_0001>
module attributes {stable_mosaic.version = 11 : i64} {
  func.func @_mlp_kernel(%arg0: i32, %arg1: memref<200x16xf32, #tpu.memory_space<vmem>>, %arg2: memref<16x32xbf16, #tpu.memory_space<vmem>>, %arg3: memref<1x32xf32, #tpu.memory_space<vmem>>, %arg4: memref<32x32xbf16, #tpu.memory_space<vmem>>, %arg5: memref<1x32xf32, #tpu.memory_space<vmem>>, %arg6: memref<200x32xf32, #tpu.memory_space<vmem>>) attributes {dimension_semantics = [#tpu.dimension_semantics<parallel>], iteration_bounds = array<i64: 1>, scalar_prefetch = 0 : i64, scratch_operands = 0 : i64, tpu.core_type = #tpu.core_type<tc>, window_params = [{transform_indices = @transform_0, window_bounds = array<i64: 200, 16>}, {pipeline_mode = #tpu.pipeline_mode<synchronous>, transform_indices = @transform_1, window_bounds = array<i64: 16, 32>}, {pipeline_mode = #tpu.pipeline_mode<synchronous>, transform_indices = @transform_2, window_bounds = array<i64: 1, 32>}, {pipeline_mode = #tpu.pipeline_mode<synchronous>, transform_indices = @transform_3, window_bounds = array<i64: 32, 32>}, {pipeline_mode = #tpu.pipeline_mode<synchronous>, transform_indices = @transform_4, window_bounds = array<i64: 1, 32>}, {transform_indices = @transform_5, window_bounds = array<i64: 200, 32>}]} {
    %c0 = arith.constant 0 : index
    %c0_0 = arith.constant 0 : index
    %0 = vector.load %arg1[%c0, %c0_0] : memref<200x16xf32, #tpu.memory_space<vmem>>, vector<200x16xf32>
    %1 = arith.truncf %0 : vector<200x16xf32> to vector<200x16xbf16>
    %c0_1 = arith.constant 0 : index
    %c0_2 = arith.constant 0 : index
    %2 = vector.load %arg2[%c0_1, %c0_2] : memref<16x32xbf16, #tpu.memory_space<vmem>>, vector<16x32xbf16>
    %cst = arith.constant dense<0.000000e+00> : vector<200x32xf32>
    %3 = tpu.matmul %1, %2, %cst {dimension_numbers = #tpu.dot_dimension_numbers<[1], [0], [0], [1], [0, 0, 1, 1], [], []>} : vector<200x16xbf16>, vector<16x32xbf16>, vector<200x32xf32> -> vector<200x32xf32>
    %c0_3 = arith.constant 0 : index
    %c0_4 = arith.constant 0 : index
    %4 = vector.load %arg3[%c0_3, %c0_4] : memref<1x32xf32, #tpu.memory_space<vmem>>, vector<1x32xf32>
    %5 = vector.broadcast %4 : vector<1x32xf32> to vector<200x32xf32>
    %6 = arith.addf %3, %5 : vector<200x32xf32>
    %cst_5 = arith.constant 0.00999999977 : f32
    %7 = vector.broadcast %cst_5 : f32 to vector<200x32xf32>
    %8 = arith.mulf %7, %6 : vector<200x32xf32>
    %9 = arith.maximumf %6, %8 : vector<200x32xf32>
    %10 = arith.truncf %9 : vector<200x32xf32> to vector<200x32xbf16>
    %c0_6 = arith.constant 0 : index
    %c0_7 = arith.constant 0 : index
    %11 = vector.load %arg4[%c0_6, %c0_7] : memref<32x32xbf16, #tpu.memory_space<vmem>>, vector<32x32xbf16>
    %cst_8 = arith.constant dense<0.000000e+00> : vector<200x32xf32>
    %12 = tpu.matmul %10, %11, %cst_8 {dimension_numbers = #tpu.dot_dimension_numbers<[1], [0], [0], [1], [0, 0, 1, 1], [], []>} : vector<200x32xbf16>, vector<32x32xbf16>, vector<200x32xf32> -> vector<200x32xf32>
    %c0_9 = arith.constant 0 : index
    %c0_10 = arith.constant 0 : index
    %13 = vector.load %arg5[%c0_9, %c0_10] : memref<1x32xf32, #tpu.memory_space<vmem>>, vector<1x32xf32>
    %14 = vector.broadcast %13 : vector<1x32xf32> to vector<200x32xf32>
    %15 = arith.addf %12, %14 : vector<200x32xf32>
    %c0_11 = arith.constant 0 : index
    %c0_12 = arith.constant 0 : index
    %16 = vector.load %arg6[%c0_11, %c0_12] : memref<200x32xf32, #tpu.memory_space<vmem>>, vector<200x32xf32>
    tpu.vector_store %arg6[%c0_11, %c0_12], %15 {strides = array<i32>} : memref<200x32xf32, #tpu.memory_space<vmem>>, vector<200x32xf32>,
    return
  }
  func.func @transform_0(%arg0: i32) -> (i32, i32) {
    %c0_i32 = arith.constant 0 : i32
    %c0_i32_0 = arith.constant 0 : i32
    return %arg0, %c0_i32 : i32, i32
  }
  func.func @transform_1(%arg0: i32) -> (i32, i32) {
    %c0_i32 = arith.constant 0 : i32
    %c0_i32_0 = arith.constant 0 : i32
    %c0_i32_1 = arith.constant 0 : i32
    return %c0_i32, %c0_i32_0 : i32, i32
  }
  func.func @transform_2(%arg0: i32) -> (i32, i32) {
    %c0_i32 = arith.constant 0 : i32
    %c0_i32_0 = arith.constant 0 : i32
    %c0_i32_1 = arith.constant 0 : i32
    return %c0_i32, %c0_i32_0 : i32, i32
  }
  func.func @transform_3(%arg0: i32) -> (i32, i32) {
    %c0_i32 = arith.constant 0 : i32
    %c0_i32_0 = arith.constant 0 : i32
    %c0_i32_1 = arith.constant 0 : i32
    return %c0_i32, %c0_i32_0 : i32, i32
  }
  func.func @transform_4(%arg0: i32) -> (i32, i32) {
    %c0_i32 = arith.constant 0 : i32
    %c0_i32_0 = arith.constant 0 : i32
    %c0_i32_1 = arith.constant 0 : i32
    return %c0_i32, %c0_i32_0 : i32, i32
  }
  func.func @transform_5(%arg0: i32) -> (i32, i32) {
    %c0_i32 = arith.constant 0 : i32
    %c0_i32_0 = arith.constant 0 : i32
    return %arg0, %c0_i32 : i32, i32
  }
}

</mosaic_0001>

<llo_original>
// kernel: tpu_custom_call.1
$region0: #{tpu_custom_call.1}
  #allocation0 [shape = 'u32[]', space=smem, size = 0x4, offset = 0x4, fixed_abs, tag = 'smem constant byte address 0x4 - core index']
  #allocation1 [shape = 'u32[72,128]{1,0:T(1,128)}', space=vmem, size = 0x9000, scoped, tag = 'internal scratch']
  %s0 = inlined_call_operand.vmem [shape: f32[200,16], index: 0, kind: input, shape index: {}]
  %s1 = inlined_call_operand.vmem [shape: bf16[16,32], index: 1, kind: input, shape index: {}]
  %s2 = inlined_call_operand.vmem [shape: f32[1,32], index: 2, kind: input, shape index: {}]
  %s3 = inlined_call_operand.vmem [shape: bf16[32,32], index: 3, kind: input, shape index: {}]
  %s4 = inlined_call_operand.vmem [shape: f32[1,32], index: 4, kind: input, shape index: {}]
  %s5 = inlined_call_operand.vmem [shape: f32[200,32], index: 5, kind: output, shape index: {}]
  %s6 = sld [smem:[#allocation0]]
  $region30: #{tpu_custom_call.1} parent=0
    _
  %s8 = ssub.s32 1, %s6
  %s9 = scalar_select 0, %s8, %s6
  // Predicated region
  $region2: #{tpu_custom_call.1} parent=0 // pred_check
    _
  $region3: #{tpu_custom_call.1} parent=0 // pred_check_branch
    %11 = sbr.rel (0) target = $region5
  $region4: #{tpu_custom_call.1} parent=0 // pred_region
    _
  $region5: #{tpu_custom_call.1} parent=0 // pred_fallthru
    _
  // Predicated region
  $region6: #{tpu_custom_call.1} parent=0 // pred_check
    _
  $region7: #{tpu_custom_call.1} parent=0 // pred_check_branch
    %13 = sbr.rel (0) target = $region9
  $region8: #{tpu_custom_call.1} parent=0 // pred_region
    _
  $region9: #{tpu_custom_call.1} parent=0 // pred_fallthru
    _
  // Predicated region
  $region10: #{tpu_custom_call.1} parent=0 // pred_check
    _
  $region11: #{tpu_custom_call.1} parent=0 // pred_check_branch
    %15 = sbr.rel (0) target = $region13
  $region12: #{tpu_custom_call.1} parent=0 // pred_region
    _
  $region13: #{tpu_custom_call.1} parent=0 // pred_fallthru
    _
  // Predicated region
  $region14: #{tpu_custom_call.1} parent=0 // pred_check
    _
  $region15: #{tpu_custom_call.1} parent=0 // pred_check_branch
    %17 = sbr.rel (0) target = $region17
  $region16: #{tpu_custom_call.1} parent=0 // pred_region
    _
  $region17: #{tpu_custom_call.1} parent=0 // pred_fallthru
    _
  // Predicated region
  $region18: #{tpu_custom_call.1} parent=0 // pred_check
    _
  $region19: #{tpu_custom_call.1} parent=0 // pred_check_branch
    %19 = sbr.rel (0) target = $region21
  $region20: #{tpu_custom_call.1} parent=0 // pred_region
    _
  $region21: #{tpu_custom_call.1} parent=0 // pred_fallthru
    _
  %v21 = vld [vmem:[%s0] sm:$0xff]
  %v22 = vld [vmem:[%s0 + $0x8] sm:$0xff]
  %v23 = vld [vmem:[%s0 + $0x10] sm:$0xff]
  %v24 = vld [vmem:[%s0 + $0x18] sm:$0xff]
  %v25 = vld [vmem:[%s0 + $0x20] sm:$0xff]
  %v26 = vld [vmem:[%s0 + $0x28] sm:$0xff]
  %v27 = vld [vmem:[%s0 + $0x30] sm:$0xff]
  %v28 = vld [vmem:[%s0 + $0x38] sm:$0xff]
  %v29 = vld [vmem:[%s0 + $0x40] sm:$0xff]
  %v30 = vld [vmem:[%s0 + $0x48] sm:$0xff]
  %v31 = vld [vmem:[%s0 + $0x50] sm:$0xff]
  %v32 = vld [vmem:[%s0 + $0x58] sm:$0xff]
  %v33 = vld [vmem:[%s0 + $0x60] sm:$0xff]
  %v34 = vld [vmem:[%s0 + $0x68] sm:$0xff]
  %v35 = vld [vmem:[%s0 + $0x70] sm:$0xff]
  %v36 = vld [vmem:[%s0 + $0x78] sm:$0xff]
  %v37 = vld [vmem:[%s0 + $0x80] sm:$0xff]
  %v38 = vld [vmem:[%s0 + $0x88] sm:$0xff]
  %v39 = vld [vmem:[%s0 + $0x90] sm:$0xff]
  %v40 = vld [vmem:[%s0 + $0x98] sm:$0xff]
  %v41 = vld [vmem:[%s0 + $0xa0] sm:$0xff]
  %v42 = vld [vmem:[%s0 + $0xa8] sm:$0xff]
  %v43 = vld [vmem:[%s0 + $0xb0] sm:$0xff]
  %v44 = vld [vmem:[%s0 + $0xb8] sm:$0xff]
  %v45 = vld [vmem:[%s0 + $0xc0] sm:$0xff]
  %v46 = vpack.c.bf16 %v22, %v21
  %v47 = vpack.c.bf16 %v24, %v23
  %v48 = vpack.c.bf16 %v26, %v25
  %v49 = vpack.c.bf16 %v28, %v27
  %v50 = vpack.c.bf16 %v30, %v29
  %v51 = vpack.c.bf16 %v32, %v31
  %v52 = vpack.c.bf16 %v34, %v33
  %v53 = vpack.c.bf16 %v36, %v35
  %v54 = vpack.c.bf16 %v38, %v37
  %v55 = vpack.c.bf16 %v40, %v39
  %v56 = vpack.c.bf16 %v42, %v41
  %v57 = vpack.c.bf16 %v44, %v43
  %v58 = vpack.c.bf16 %v45, %v45
  %v59 = vld [vmem:[%s1] sm:$0xf]
  %v60 = vld [vmem:[%s1 + $0x4] sm:$0xf]
  %v61 = vld [vmem:[%s2] sm:$0x1]
  %v63 = vperm.slane %v61, 0
  %v67 = vunpack.c.l.b16 %v59
  %v68 = vunpack.c.l.b16 %v60
  %v69 = vpack.c.b16 %v68, %v67
  %vm71 = vcmask 130048
  %v73 = vsel %vm71, %v46, 0
  %v76 = vsel %vm71, %v47, 0
  %v79 = vsel %vm71, %v48, 0
  %v82 = vsel %vm71, %v49, 0
  %v85 = vsel %vm71, %v50, 0
  %v88 = vsel %vm71, %v51, 0
  %v91 = vsel %vm71, %v52, 0
  %v94 = vsel %vm71, %v53, 0
  %v97 = vsel %vm71, %v54, 0
  %v100 = vsel %vm71, %v55, 0
  %v103 = vsel %vm71, %v56, 0
  %v106 = vsel %vm71, %v57, 0
  %v109 = vsel %vm71, %v58, 0
  %111 = vmatpush.bf16.msra.mxu0 0
  %112 = vmatpush.bf16.msra.mxu0 0
  %113 = vmatpush.bf16.msra.mxu0 0
  %114 = vmatpush.bf16.msra.mxu0 0
  %115 = vmatpush.bf16.msra.mxu0 0
  %116 = vmatpush.bf16.msra.mxu0 0
  %117 = vmatpush.bf16.msra.mxu0 0
  %118 = vmatpush.bf16.msra.mxu0 %v69
  %119 = vmatmul.bf16.gmra.mxu0 %v73
  %v120 = vpop.f32.mrf.mxu0
  %v121 = vadd.f32 %v63, %v120
  %v122 = vpop.f32.mrf.mxu0
  %v123 = vadd.f32 %v63, %v122
  %124 = vmatmul.bf16.gmra.mxu0 %v76
  %v125 = vpop.f32.mrf.mxu0
  %v126 = vadd.f32 %v63, %v125
  %v127 = vpop.f32.mrf.mxu0
  %v128 = vadd.f32 %v63, %v127
  %129 = vmatmul.bf16.gmra.mxu0 %v79
  %v130 = vpop.f32.mrf.mxu0
  %v131 = vadd.f32 %v63, %v130
  %v132 = vpop.f32.mrf.mxu0
  %v133 = vadd.f32 %v63, %v132
  %134 = vmatmul.bf16.gmra.mxu0 %v82
  %v135 = vpop.f32.mrf.mxu0
  %v136 = vadd.f32 %v63, %v135
  %v137 = vpop.f32.mrf.mxu0
  %v138 = vadd.f32 %v63, %v137
  %139 = vmatmul.bf16.gmra.mxu0 %v85
  %v140 = vpop.f32.mrf.mxu0
  %v141 = vadd.f32 %v63, %v140
  %v142 = vpop.f32.mrf.mxu0
  %v143 = vadd.f32 %v63, %v142
  %144 = vmatmul.bf16.gmra.mxu0 %v88
  %v145 = vpop.f32.mrf.mxu0
  %v146 = vadd.f32 %v63, %v145
  %v147 = vpop.f32.mrf.mxu0
  %v148 = vadd.f32 %v63, %v147
  %149 = vmatmul.bf16.gmra.mxu0 %v91
  %v150 = vpop.f32.mrf.mxu0
  %v151 = vadd.f32 %v63, %v150
  %v152 = vpop.f32.mrf.mxu0
  %v153 = vadd.f32 %v63, %v152
  %154 = vmatmul.bf16.gmra.mxu0 %v94
  %v155 = vpop.f32.mrf.mxu0
  %v156 = vadd.f32 %v63, %v155
  %v157 = vpop.f32.mrf.mxu0
  %v158 = vadd.f32 %v63, %v157
  %159 = vmatmul.bf16.gmra.mxu0 %v97
  %v160 = vpop.f32.mrf.mxu0
  %v161 = vadd.f32 %v63, %v160
  %v162 = vpop.f32.mrf.mxu0
  %v163 = vadd.f32 %v63, %v162
  %164 = vmatmul.bf16.gmra.mxu0 %v100
  %v165 = vpop.f32.mrf.mxu0
  %v166 = vadd.f32 %v63, %v165
  %v167 = vpop.f32.mrf.mxu0
  %v168 = vadd.f32 %v63, %v167
  %169 = vmatmul.bf16.gmra.mxu0 %v103
  %v170 = vpop.f32.mrf.mxu0
  %v171 = vadd.f32 %v63, %v170
  %v172 = vpop.f32.mrf.mxu0
  %v173 = vadd.f32 %v63, %v172
  %174 = vmatmul.bf16.gmra.mxu0 %v106
  %v175 = vpop.f32.mrf.mxu0
  %v176 = vadd.f32 %v63, %v175
  %v177 = vpop.f32.mrf.mxu0
  %v178 = vadd.f32 %v63, %v177
  %179 = vmatmul.bf16.gmra.mxu0 %v109
  %v180 = vpop.f32.mrf.mxu0
  %v181 = vadd.f32 %v63, %v180
  %v182 = vpop.f32.mrf.mxu0
  %183 = vdwg.mxu0
  %v184 = vmul.f32 %v121, 0.01
  %v185 = vmul.f32 %v123, 0.01
  %v186 = vmul.f32 %v126, 0.01
  %v187 = vmul.f32 %v128, 0.01
  %v188 = vmul.f32 %v131, 0.01
  %v189 = vmul.f32 %v133, 0.01
  %v190 = vmul.f32 %v136, 0.01
  %v191 = vmul.f32 %v138, 0.01
  %v192 = vmul.f32 %v141, 0.01
  %v193 = vmul.f32 %v143, 0.01
  %v194 = vmul.f32 %v146, 0.01
  %v195 = vmul.f32 %v148, 0.01
  %v196 = vmul.f32 %v151, 0.01
  %v197 = vmul.f32 %v153, 0.01
  %v198 = vmul.f32 %v156, 0.01
  %v199 = vmul.f32 %v158, 0.01
  %v200 = vmul.f32 %v161, 0.01
  %v201 = vmul.f32 %v163, 0.01
  %v202 = vmul.f32 %v166, 0.01
  %v203 = vmul.f32 %v168, 0.01
  %v204 = vmul.f32 %v171, 0.01
  %v205 = vmul.f32 %v173, 0.01
  %v206 = vmul.f32 %v176, 0.01
  %v207 = vmul.f32 %v178, 0.01
  %v208 = vmul.f32 %v181, 0.01
  %v209 = vmax.f32 %v121, %v184
  %v210 = vmax.f32 %v123, %v185
  %v211 = vmax.f32 %v126, %v186
  %v212 = vmax.f32 %v128, %v187
  %v213 = vmax.f32 %v131, %v188
  %v214 = vmax.f32 %v133, %v189
  %v215 = vmax.f32 %v136, %v190
  %v216 = vmax.f32 %v138, %v191
  %v217 = vmax.f32 %v141, %v192
  %v218 = vmax.f32 %v143, %v193
  %v219 = vmax.f32 %v146, %v194
  %v220 = vmax.f32 %v148, %v195
  %v221 = vmax.f32 %v151, %v196
  %v222 = vmax.f32 %v153, %v197
  %v223 = vmax.f32 %v156, %v198
  %v224 = vmax.f32 %v158, %v199
  %v225 = vmax.f32 %v161, %v200
  %v226 = vmax.f32 %v163, %v201
  %v227 = vmax.f32 %v166, %v202
  %v228 = vmax.f32 %v168, %v203
  %v229 = vmax.f32 %v171, %v204
  %v230 = vmax.f32 %v173, %v205
  %v231 = vmax.f32 %v176, %v206
  %v232 = vmax.f32 %v178, %v207
  %v233 = vmax.f32 %v181, %v208
  %v234 = vpack.c.bf16 %v210, %v209
  %v235 = vpack.c.bf16 %v212, %v211
  %v236 = vpack.c.bf16 %v214, %v213
  %v237 = vpack.c.bf16 %v216, %v215
  %v238 = vpack.c.bf16 %v218, %v217
  %v239 = vpack.c.bf16 %v220, %v219
  %v240 = vpack.c.bf16 %v222, %v221
  %v241 = vpack.c.bf16 %v224, %v223
  %v242 = vpack.c.bf16 %v226, %v225
  %v243 = vpack.c.bf16 %v228, %v227
  %v244 = vpack.c.bf16 %v230, %v229
  %v245 = vpack.c.bf16 %v232, %v231
  %v246 = vpack.c.bf16 %v233, %v233
  %v247 = vld [vmem:[%s3] sm:$0xf]
  %v248 = vld [vmem:[%s3 + $0x4] sm:$0xf]
  %v249 = vld [vmem:[%s3 + $0x8] sm:$0xf]
  %v250 = vld [vmem:[%s3 + $0xc] sm:$0xf]
  %v251 = vld [vmem:[%s4] sm:$0x1]
  %v253 = vperm.slane %v251, 0
  %v259 = vunpack.c.l.b16 %v247
  %v260 = vunpack.c.l.b16 %v248
  %v261 = vunpack.c.l.b16 %v249
  %v262 = vunpack.c.l.b16 %v250
  %v263 = vpack.c.b16 %v260, %v259
  %v264 = vpack.c.b16 %v262, %v261
  %vm267 = vcmask 261120
  %v269 = vsel %vm267, %v234, 0
  %v272 = vsel %vm267, %v235, 0
  %v275 = vsel %vm267, %v236, 0
  %v278 = vsel %vm267, %v237, 0
  %v281 = vsel %vm267, %v238, 0
  %v284 = vsel %vm267, %v239, 0
  %v287 = vsel %vm267, %v240, 0
  %v290 = vsel %vm267, %v241, 0
  %v293 = vsel %vm267, %v242, 0
  %v296 = vsel %vm267, %v243, 0
  %v299 = vsel %vm267, %v244, 0
  %v302 = vsel %vm267, %v245, 0
  %v305 = vsel %vm267, %v246, 0
  %307 = vmatpush.bf16.msra.mxu0 0
  %308 = vmatpush.bf16.msra.mxu0 0
  %309 = vmatpush.bf16.msra.mxu0 0
  %310 = vmatpush.bf16.msra.mxu0 0
  %311 = vmatpush.bf16.msra.mxu0 0
  %312 = vmatpush.bf16.msra.mxu0 0
  %313 = vmatpush.bf16.msra.mxu0 %v264
  %314 = vmatpush.bf16.msra.mxu0 %v263
  %315 = vmatmul.bf16.gmra.mxu0 %v269
  %v316 = vpop.f32.mrf.mxu0
  %v317 = vadd.f32 %v253, %v316
  %v318 = vpop.f32.mrf.mxu0
  %v319 = vadd.f32 %v253, %v318
  %320 = vmatmul.bf16.gmra.mxu0 %v272
  %v321 = vpop.f32.mrf.mxu0
  %v322 = vadd.f32 %v253, %v321
  %v323 = vpop.f32.mrf.mxu0
  %v324 = vadd.f32 %v253, %v323
  %325 = vmatmul.bf16.gmra.mxu0 %v275
  %v326 = vpop.f32.mrf.mxu0
  %v327 = vadd.f32 %v253, %v326
  %v328 = vpop.f32.mrf.mxu0
  %v329 = vadd.f32 %v253, %v328
  %330 = vmatmul.bf16.gmra.mxu0 %v278
  %v331 = vpop.f32.mrf.mxu0
  %v332 = vadd.f32 %v253, %v331
  %v333 = vpop.f32.mrf.mxu0
  %v334 = vadd.f32 %v253, %v333
  %335 = vmatmul.bf16.gmra.mxu0 %v281
  %v336 = vpop.f32.mrf.mxu0
  %v337 = vadd.f32 %v253, %v336
  %v338 = vpop.f32.mrf.mxu0
  %v339 = vadd.f32 %v253, %v338
  %340 = vmatmul.bf16.gmra.mxu0 %v284
  %v341 = vpop.f32.mrf.mxu0
  %v342 = vadd.f32 %v253, %v341
  %v343 = vpop.f32.mrf.mxu0
  %v344 = vadd.f32 %v253, %v343
  %345 = vmatmul.bf16.gmra.mxu0 %v287
  %v346 = vpop.f32.mrf.mxu0
  %v347 = vadd.f32 %v253, %v346
  %v348 = vpop.f32.mrf.mxu0
  %v349 = vadd.f32 %v253, %v348
  %350 = vmatmul.bf16.gmra.mxu0 %v290
  %v351 = vpop.f32.mrf.mxu0
  %v352 = vadd.f32 %v253, %v351
  %v353 = vpop.f32.mrf.mxu0
  %v354 = vadd.f32 %v253, %v353
  %355 = vmatmul.bf16.gmra.mxu0 %v293
  %v356 = vpop.f32.mrf.mxu0
  %v357 = vadd.f32 %v253, %v356
  %v358 = vpop.f32.mrf.mxu0
  %v359 = vadd.f32 %v253, %v358
  %360 = vmatmul.bf16.gmra.mxu0 %v296
  %v361 = vpop.f32.mrf.mxu0
  %v362 = vadd.f32 %v253, %v361
  %v363 = vpop.f32.mrf.mxu0
  %v364 = vadd.f32 %v253, %v363
  %365 = vmatmul.bf16.gmra.mxu0 %v299
  %v366 = vpop.f32.mrf.mxu0
  %v367 = vadd.f32 %v253, %v366
  %v368 = vpop.f32.mrf.mxu0
  %v369 = vadd.f32 %v253, %v368
  %370 = vmatmul.bf16.gmra.mxu0 %v302
  %v371 = vpop.f32.mrf.mxu0
  %v372 = vadd.f32 %v253, %v371
  %v373 = vpop.f32.mrf.mxu0
  %v374 = vadd.f32 %v253, %v373
  %375 = vmatmul.bf16.gmra.mxu0 %v305
  %v376 = vpop.f32.mrf.mxu0
  %v377 = vadd.f32 %v253, %v376
  %v378 = vpop.f32.mrf.mxu0
  %379 = vdwg.mxu0
  %380 = vst.msk [vmem:[%s5] sm:$0xff] %vm267, %v317
  %381 = vst.msk [vmem:[%s5 + $0x8] sm:$0xff] %vm267, %v319
  %382 = vst.msk [vmem:[%s5 + $0x10] sm:$0xff] %vm267, %v322
  %383 = vst.msk [vmem:[%s5 + $0x18] sm:$0xff] %vm267, %v324
  %384 = vst.msk [vmem:[%s5 + $0x20] sm:$0xff] %vm267, %v327
  %385 = vst.msk [vmem:[%s5 + $0x28] sm:$0xff] %vm267, %v329
  %386 = vst.msk [vmem:[%s5 + $0x30] sm:$0xff] %vm267, %v332
  %387 = vst.msk [vmem:[%s5 + $0x38] sm:$0xff] %vm267, %v334
  %388 = vst.msk [vmem:[%s5 + $0x40] sm:$0xff] %vm267, %v337
  %389 = vst.msk [vmem:[%s5 + $0x48] sm:$0xff] %vm267, %v339
  %390 = vst.msk [vmem:[%s5 + $0x50] sm:$0xff] %vm267, %v342
  %391 = vst.msk [vmem:[%s5 + $0x58] sm:$0xff] %vm267, %v344
  %392 = vst.msk [vmem:[%s5 + $0x60] sm:$0xff] %vm267, %v347
  %393 = vst.msk [vmem:[%s5 + $0x68] sm:$0xff] %vm267, %v349
  %394 = vst.msk [vmem:[%s5 + $0x70] sm:$0xff] %vm267, %v352
  %395 = vst.msk [vmem:[%s5 + $0x78] sm:$0xff] %vm267, %v354
  %396 = vst.msk [vmem:[%s5 + $0x80] sm:$0xff] %vm267, %v357
  %397 = vst.msk [vmem:[%s5 + $0x88] sm:$0xff] %vm267, %v359
  %398 = vst.msk [vmem:[%s5 + $0x90] sm:$0xff] %vm267, %v362
  %399 = vst.msk [vmem:[%s5 + $0x98] sm:$0xff] %vm267, %v364
  %400 = vst.msk [vmem:[%s5 + $0xa0] sm:$0xff] %vm267, %v367
  %401 = vst.msk [vmem:[%s5 + $0xa8] sm:$0xff] %vm267, %v369
  %402 = vst.msk [vmem:[%s5 + $0xb0] sm:$0xff] %vm267, %v372
  %403 = vst.msk [vmem:[%s5 + $0xb8] sm:$0xff] %vm267, %v374
  %404 = vst.msk [vmem:[%s5 + $0xc0] sm:$0xff] %vm267, %v377
  // Predicated region
  $region22: #{tpu_custom_call.1} parent=0 // pred_check
    _
  $region23: #{tpu_custom_call.1} parent=0 // pred_check_branch
    %406 = sbr.rel (0) target = $region25
  $region24: #{tpu_custom_call.1} parent=0 // pred_region
    _
  $region25: #{tpu_custom_call.1} parent=0 // pred_fallthru
    _
  // Predicated region
  $region26: #{tpu_custom_call.1} parent=0 // pred_check
    _
  $region27: #{tpu_custom_call.1} parent=0 // pred_check_branch
    %408 = sbr.rel (0) target = $region29
  $region28: #{tpu_custom_call.1} parent=0 // pred_region
    _
  $region29: #{tpu_custom_call.1} parent=0 // pred_fallthru
    _

</llo_original>
